<compile_context>
chip_gen: v6e
topology: v6e:2x2x1
jax: 0.10.0
libtpu: 0.0.40
codegen_flags: <defaults>
</compile_context>

<pallas_src>
import functools

import jax
import jax.numpy as jnp
from jax.experimental import pallas as pl
from jax.experimental.pallas import tpu as pltpu


def _round_up(x, m):
    return ((x + m - 1) // m) * m


def _pnn_out_kernel(z_ref, se_ref, wz_ref, rab_ref, wp_ref, b_ref, out_ref):
    """One batch tile, everything resident in VMEM.

    z_ref  : (TB, F*E)    flattened z              (input dtype, cast in-kernel)
    se_ref : (TB, F*E)    flattened sparse embeds  (input dtype, cast in-kernel)
    wz_ref : (F*E, H)     w_z flattened            (compute dtype)
    rab_ref: (F*E, 2*E*E) [RA | RB] field-sum/expansion 0-1 matrix (compute dtype)
    wp_ref : (E*E, H)     w_p flattened            (float32 -- accuracy)
    b_ref  : (1, H)       bias                     (float32)
    out_ref: (TB, H)      output                   (out dtype)
    """
    cd = wz_ref.dtype

    # l_z[b, h] = sum_{f,e} z[b, f*E+e] * w_z[f, e, h]           (MXU, f32 acc)
    l_z = jnp.dot(z_ref[...].astype(cd), wz_ref[...],
                  preferred_element_type=jnp.float32)

    # ab[:, :EE]  = f_sum[b, e1]  repeated over e2   (A)
    # ab[:, EE:]  = f_sum[b, e2]  tiled    over e1   (B)          (MXU, f32 acc)
    ab = jnp.dot(se_ref[...].astype(cd), rab_ref[...],
                 preferred_element_type=jnp.float32)
    ee = rab_ref.shape[-1] // 2

    # p_flat[b, e1*E+e2] = f_sum[b, e1] * f_sum[b, e2]   -- kept in f32.
    p_flat = ab[:, :ee] * ab[:, ee:]

    # l_p = p_flat @ w_p_flat   (f32 x f32, MXU has slack at memory-bound)
    l_p = jnp.dot(p_flat, wp_ref[...], preferred_element_type=jnp.float32)

    out_ref[...] = (l_z + l_p + b_ref[...]).astype(out_ref.dtype)


@functools.partial(
    jax.jit,
    static_argnames=("tile_b", "compute_dtype", "out_dtype", "vmem_limit_bytes"))
def product_layer_out(z, sparse_embeds, w_z, w_p, l_b, *,
                      tile_b=4096,
                      compute_dtype=jnp.bfloat16,
                      out_dtype=jnp.float32,
                      vmem_limit_bytes=None):
    """JAX wrapper reproducing Productlayer.forward for mode='out'.

    z             : (B, F, E)
    sparse_embeds : (B, F, E)
    w_z           : (F, E, H)
    w_p           : (E, E, H)
    l_b           : (H,)
    returns       : (B, H) in out_dtype (default float32, matching the module)
    """
    B, F, E = z.shape
    H = w_z.shape[-1]
    FE, EE = F * E, E * E

    # ---- activations: free reshapes only (no host pad / cast passes) --------
    z_flat = z.reshape(B, FE)
    se_flat = sparse_embeds.reshape(B, FE)

    # ---- batch tiling --------------------------------------------------------
    # Cap the tile so that (a) it is a multiple of 8 rows and (b) there are at
    # least 2 grid steps whenever B permits -> both v7x TensorCores get work.
    tile_b = _round_up(max(8, min(int(tile_b), _round_up(pl.cdiv(B, 2), 8))), 8)
    grid = (pl.cdiv(B, tile_b),)          # ragged last block handled by Pallas

    # ---- host-side weight prep (tiny, VMEM-resident constants) --------------
    # wz_flat[f*E+e, h] = w_z[f, e, h]  (== torch permute(2,0,1).reshape(H,-1).T)
    wz_flat = w_z.reshape(FE, H).astype(compute_dtype)

    # RA[f*E+e, e1*E+e2] = (e == e1)   -> se_flat @ RA = f_sum[b, e1] (repeat)
    # RB[f*E+e, e1*E+e2] = (e == e2)   -> se_flat @ RB = f_sum[b, e2] (tile)
    eye = jnp.eye(E, dtype=jnp.float32)
    RA = jnp.tile(jnp.repeat(eye, E, axis=1), (F, 1))          # (FE, EE)
    RB = jnp.tile(jnp.tile(eye, (1, E)), (F, 1))               # (FE, EE)
    rab = jnp.concatenate([RA, RB], axis=1).astype(compute_dtype)   # (FE, 2EE)

    # Keep w_p and the bias in f32: p_flat can be large (squared field sums).
    wp_flat = w_p.reshape(EE, H).astype(jnp.float32)
    bias = l_b.astype(jnp.float32).reshape(1, H)

    # ---- cost estimate (scheduling hint only) --------------------------------
    flops = 2 * B * (FE * H + FE * 2 * EE + EE * H)
    bytes_accessed = (
        z_flat.size * z_flat.dtype.itemsize
        + se_flat.size * se_flat.dtype.itemsize
        + wz_flat.size * wz_flat.dtype.itemsize
        + rab.size * rab.dtype.itemsize
        + wp_flat.size * 4 + bias.size * 4
        + B * H * jnp.dtype(out_dtype).itemsize)
    cost = pl.CostEstimate(flops=flops, transcendentals=0,
                           bytes_accessed=bytes_accessed)

    cp_kwargs = dict(dimension_semantics=("parallel",))
    if vmem_limit_bytes is not None:
        cp_kwargs["vmem_limit_bytes"] = int(vmem_limit_bytes)

    const = lambda i: (0, 0)              # weights stay VMEM-resident

    out = pl.pallas_call(
        _pnn_out_kernel,
        out_shape=jax.ShapeDtypeStruct((B, H), out_dtype),
        grid_spec=pltpu.PrefetchScalarGridSpec(
            num_scalar_prefetch=0,
            grid=grid,
            in_specs=[
                pl.BlockSpec((tile_b, FE), lambda i: (i, 0)),   # z
                pl.BlockSpec((tile_b, FE), lambda i: (i, 0)),   # sparse_embeds
                pl.BlockSpec((FE, H), const),                   # w_z flat
                pl.BlockSpec((FE, 2 * EE), const),              # [RA | RB]
                pl.BlockSpec((EE, H), const),                   # w_p flat (f32)
                pl.BlockSpec((1, H), const),                    # bias (f32)
            ],
            out_specs=pl.BlockSpec((tile_b, H), lambda i: (i, 0)),
        ),
        compiler_params=pltpu.CompilerParams(**cp_kwargs),
        cost_estimate=cost,
    )(z_flat, se_flat, wz_flat, rab, wp_flat, bias)

    return out


def product_layer_out_ref(z, sparse_embeds, w_z, w_p, l_b):
    """Pure-JAX reference mirroring the PyTorch forward (mode='out').

    Deliberately written without matmuls (broadcast-multiply + f32 reduce) so
    the reference is exact f32 regardless of the backend's default matmul
    precision.
    """
    l_z = jnp.sum(z[:, :, :, None] * w_z[None, :, :, :], axis=(1, 2))       # (B, H)
    f_sum = jnp.sum(sparse_embeds, axis=1)                                   # (B, E)
    p = f_sum[:, :, None] * f_sum[:, None, :]                                # (B, E, E)
    l_p = jnp.sum(p[:, :, :, None] * w_p[None, :, :, :], axis=(1, 2))        # (B, H)
    return l_z + l_p + l_b[None, :]


if __name__ == "__main__":
    # Small, module-consistent shapes.
    B = 8            # batch
    F = 4            # filed_nums
    E = 8            # embed_nums
    H = 32           # hidden_units[0]

    key = jax.random.PRNGKey(0)
    k_z, k_se, k_wz, k_wp, k_b = jax.random.split(key, 5)

    z = jax.random.normal(k_z, (B, F, E), dtype=jnp.float32)
    sparse_embeds = jax.random.normal(k_se, (B, F, E), dtype=jnp.float32)

    # Deterministic parameter init (torch.rand -> uniform [0, 1))
    w_z = jax.random.uniform(k_wz, (F, E, H), dtype=jnp.float32)
    w_p = jax.random.uniform(k_wp, (E, E, H), dtype=jnp.float32)   # mode='out'
    l_b = jax.random.uniform(k_b, (H,), dtype=jnp.float32)

    ref = product_layer_out_ref(z, sparse_embeds, w_z, w_p, l_b)

    def hybrid_err(a, b):
        return float(jnp.max(jnp.abs(a - b) / (jnp.abs(b) + 1.0)))

    # 1) f32 compute path.
    out_f32 = jax.block_until_ready(
        product_layer_out(z, sparse_embeds, w_z, w_p, l_b,
                          tile_b=8, compute_dtype=jnp.float32))
    assert out_f32.shape == (B, H), out_f32.shape
    assert hybrid_err(out_f32, ref) < 1e-2, hybrid_err(out_f32, ref)

    # 2) bf16 fast path: tight vs. a reference built from identically
    #    bf16-quantized operands (w_p / p_flat stay f32 in both), plus a loose
    #    sanity bound against the exact f32 reference.
    out_bf16 = jax.block_until_ready(
        product_layer_out(z, sparse_embeds, w_z, w_p, l_b,
                          tile_b=8, compute_dtype=jnp.bfloat16))
    q = lambda x: x.astype(jnp.bfloat16).astype(jnp.float32)
    ref_q = product_layer_out_ref(q(z), q(sparse_embeds), q(w_z), w_p, l_b)
    assert hybrid_err(out_bf16, ref_q) < 1e-2, hybrid_err(out_bf16, ref_q)
    assert hybrid_err(out_bf16, ref) < 1.5e-1, hybrid_err(out_bf16, ref)

    # 3) Ragged batch (B not a multiple of the tile) -> exercises the pl.cdiv
    #    grid with a partially-filled last block and >= 2 grid steps.
    B2 = 20
    z2 = jax.random.normal(jax.random.PRNGKey(1), (B2, F, E), dtype=jnp.float32)
    se2 = jax.random.normal(jax.random.PRNGKey(2), (B2, F, E), dtype=jnp.float32)
    out2 = jax.block_until_ready(
        product_layer_out(z2, se2, w_z, w_p, l_b,
                          tile_b=16, compute_dtype=jnp.float32))
    ref2 = product_layer_out_ref(z2, se2, w_z, w_p, l_b)
    assert out2.shape == (B2, H), out2.shape
    assert hybrid_err(out2, ref2) < 1e-2, hybrid_err(out2, ref2)

    print("KERNEL_OK")
</pallas_src>

<mosaic_0001>
module attributes {stable_mosaic.version = 11 : i64} {
  func.func @_pnn_out_kernel(%arg0: i32, %arg1: memref<8x32xf32, #tpu.memory_space<vmem>>, %arg2: memref<8x32xf32, #tpu.memory_space<vmem>>, %arg3: memref<32x32xf32, #tpu.memory_space<vmem>>, %arg4: memref<32x128xf32, #tpu.memory_space<vmem>>, %arg5: memref<64x32xf32, #tpu.memory_space<vmem>>, %arg6: memref<1x32xf32, #tpu.memory_space<vmem>>, %arg7: memref<8x32xf32, #tpu.memory_space<vmem>>) attributes {dimension_semantics = [#tpu.dimension_semantics<parallel>], iteration_bounds = array<i64: 1>, scalar_prefetch = 0 : i64, scratch_operands = 0 : i64, tpu.core_type = #tpu.core_type<tc>, window_params = [{transform_indices = @transform_0, window_bounds = array<i64: 8, 32>}, {transform_indices = @transform_1, window_bounds = array<i64: 8, 32>}, {pipeline_mode = #tpu.pipeline_mode<synchronous>, transform_indices = @transform_2, window_bounds = array<i64: 32, 32>}, {pipeline_mode = #tpu.pipeline_mode<synchronous>, transform_indices = @transform_3, window_bounds = array<i64: 32, 128>}, {pipeline_mode = #tpu.pipeline_mode<synchronous>, transform_indices = @transform_4, window_bounds = array<i64: 64, 32>}, {pipeline_mode = #tpu.pipeline_mode<synchronous>, transform_indices = @transform_5, window_bounds = array<i64: 1, 32>}, {transform_indices = @transform_6, window_bounds = array<i64: 8, 32>}]} {
    %c0 = arith.constant 0 : index
    %c0_0 = arith.constant 0 : index
    %0 = vector.load %arg1[%c0, %c0_0] : memref<8x32xf32, #tpu.memory_space<vmem>>, vector<8x32xf32>
    %c0_1 = arith.constant 0 : index
    %c0_2 = arith.constant 0 : index
    %1 = vector.load %arg3[%c0_1, %c0_2] : memref<32x32xf32, #tpu.memory_space<vmem>>, vector<32x32xf32>
    %cst = arith.constant dense<0.000000e+00> : vector<8x32xf32>
    %2 = tpu.matmul %0, %1, %cst {dimension_numbers = #tpu.dot_dimension_numbers<[1], [0], [0], [1], [0, 0, 1, 1], [], []>} : vector<8x32xf32>, vector<32x32xf32>, vector<8x32xf32> -> vector<8x32xf32>
    %c0_3 = arith.constant 0 : index
    %c0_4 = arith.constant 0 : index
    %3 = vector.load %arg2[%c0_3, %c0_4] : memref<8x32xf32, #tpu.memory_space<vmem>>, vector<8x32xf32>
    %c0_5 = arith.constant 0 : index
    %c0_6 = arith.constant 0 : index
    %4 = vector.load %arg4[%c0_5, %c0_6] : memref<32x128xf32, #tpu.memory_space<vmem>>, vector<32x128xf32>
    %cst_7 = arith.constant dense<0.000000e+00> : vector<8x128xf32>
    %5 = tpu.matmul %3, %4, %cst_7 {dimension_numbers = #tpu.dot_dimension_numbers<[1], [0], [0], [1], [0, 0, 1, 1], [], []>} : vector<8x32xf32>, vector<32x128xf32>, vector<8x128xf32> -> vector<8x128xf32>
    %6 = vector.extract_strided_slice %5 {offsets = [0, 0], sizes = [8, 64], strides = [1, 1]} : vector<8x128xf32> to vector<8x64xf32>
    %7 = vector.extract_strided_slice %5 {offsets = [0, 64], sizes = [8, 64], strides = [1, 1]} : vector<8x128xf32> to vector<8x64xf32>
    %8 = arith.mulf %6, %7 : vector<8x64xf32>
    %c0_8 = arith.constant 0 : index
    %c0_9 = arith.constant 0 : index
    %9 = vector.load %arg5[%c0_8, %c0_9] : memref<64x32xf32, #tpu.memory_space<vmem>>, vector<64x32xf32>
    %cst_10 = arith.constant dense<0.000000e+00> : vector<8x32xf32>
    %10 = tpu.matmul %8, %9, %cst_10 {dimension_numbers = #tpu.dot_dimension_numbers<[1], [0], [0], [1], [0, 0, 1, 1], [], []>} : vector<8x64xf32>, vector<64x32xf32>, vector<8x32xf32> -> vector<8x32xf32>
    %11 = arith.addf %2, %10 : vector<8x32xf32>
    %c0_11 = arith.constant 0 : index
    %c0_12 = arith.constant 0 : index
    %12 = vector.load %arg6[%c0_11, %c0_12] : memref<1x32xf32, #tpu.memory_space<vmem>>, vector<1x32xf32>
    %13 = vector.broadcast %12 : vector<1x32xf32> to vector<8x32xf32>
    %14 = arith.addf %11, %13 : vector<8x32xf32>
    %c0_13 = arith.constant 0 : index
    %c0_14 = arith.constant 0 : index
    %15 = vector.load %arg7[%c0_13, %c0_14] : memref<8x32xf32, #tpu.memory_space<vmem>>, vector<8x32xf32>
    tpu.vector_store %arg7[%c0_13, %c0_14], %14 {strides = array<i32>} : memref<8x32xf32, #tpu.memory_space<vmem>>, vector<8x32xf32>,
    return
  }
  func.func @transform_0(%arg0: i32) -> (i32, i32) {
    %c0_i32 = arith.constant 0 : i32
    %c0_i32_0 = arith.constant 0 : i32
    return %arg0, %c0_i32 : i32, i32
  }
  func.func @transform_1(%arg0: i32) -> (i32, i32) {
    %c0_i32 = arith.constant 0 : i32
    %c0_i32_0 = arith.constant 0 : i32
    return %arg0, %c0_i32 : i32, i32
  }
  func.func @transform_2(%arg0: i32) -> (i32, i32) {
    %c0_i32 = arith.constant 0 : i32
    %c0_i32_0 = arith.constant 0 : i32
    %c0_i32_1 = arith.constant 0 : i32
    return %c0_i32, %c0_i32_0 : i32, i32
  }
  func.func @transform_3(%arg0: i32) -> (i32, i32) {
    %c0_i32 = arith.constant 0 : i32
    %c0_i32_0 = arith.constant 0 : i32
    %c0_i32_1 = arith.constant 0 : i32
    return %c0_i32, %c0_i32_0 : i32, i32
  }
  func.func @transform_4(%arg0: i32) -> (i32, i32) {
    %c0_i32 = arith.constant 0 : i32
    %c0_i32_0 = arith.constant 0 : i32
    %c0_i32_1 = arith.constant 0 : i32
    return %c0_i32, %c0_i32_0 : i32, i32
  }
  func.func @transform_5(%arg0: i32) -> (i32, i32) {
    %c0_i32 = arith.constant 0 : i32
    %c0_i32_0 = arith.constant 0 : i32
    %c0_i32_1 = arith.constant 0 : i32
    return %c0_i32, %c0_i32_0 : i32, i32
  }
  func.func @transform_6(%arg0: i32) -> (i32, i32) {
    %c0_i32 = arith.constant 0 : i32
    %c0_i32_0 = arith.constant 0 : i32
    return %arg0, %c0_i32 : i32, i32
  }
}

</mosaic_0001>

<llo_original>
// kernel: product_layer_out.1
$region0: #{product_layer_out.1}
  #allocation0 [shape = 'u32[]', space=smem, size = 0x4, offset = 0x4, fixed_abs, tag = 'smem constant byte address 0x4 - core index']
  #allocation1 [shape = 'u32[144,128]{1,0:T(1,128)}', space=vmem, size = 0x12000, scoped, tag = 'internal scratch']
  %s0 = inlined_call_operand.vmem [shape: f32[8,32], index: 0, kind: input, shape index: {}]
  %s1 = inlined_call_operand.vmem [shape: f32[8,32], index: 1, kind: input, shape index: {}]
  %s2 = inlined_call_operand.vmem [shape: f32[32,32], index: 2, kind: input, shape index: {}]
  %s3 = inlined_call_operand.vmem [shape: f32[32,128], index: 3, kind: input, shape index: {}]
  %s4 = inlined_call_operand.vmem [shape: f32[64,32], index: 4, kind: input, shape index: {}]
  %s5 = inlined_call_operand.vmem [shape: f32[1,32], index: 5, kind: input, shape index: {}]
  %s6 = inlined_call_operand.hbm [shape: f32[8,32], index: 6, kind: output, shape index: {}]
  %s7 = sld [smem:[#allocation0]]
  $region34: #{product_layer_out.1} parent=0
    _
  %s9 = ssub.s32 1, %s7
  %s10 = scalar_select 0, %s9, %s7
  $region1: #{product_layer_out.1} parent=0
    #allocation2 [shape = 'u8[4096]{0}', space=vmem, size = 0x1000, scoped, tag = 'output window, operand 0, single buffered']
    #allocation3 [shape = 's32[1]{0}', space=sflag, size = 0x4, scoped, tag = 'scoped memory for product_layer_out.1']
    %11 = vsyncpa [#allocation3], 0
    // Predicated region
    $region2: #{product_layer_out.1} parent=1 // pred_check
      _
    $region3: #{product_layer_out.1} parent=1 // pred_check_branch
      %13 = sbr.rel (0) target = $region5
    $region4: #{product_layer_out.1} parent=1 // pred_region
      _
    $region5: #{product_layer_out.1} parent=1 // pred_fallthru
      _
    // Predicated region
    $region6: #{product_layer_out.1} parent=1 // pred_check
      _
    $region7: #{product_layer_out.1} parent=1 // pred_check_branch
      %15 = sbr.rel (0) target = $region9
    $region8: #{product_layer_out.1} parent=1 // pred_region
      _
    $region9: #{product_layer_out.1} parent=1 // pred_fallthru
      _
    // Predicated region
    $region10: #{product_layer_out.1} parent=1 // pred_check
      _
    $region11: #{product_layer_out.1} parent=1 // pred_check_branch
      %17 = sbr.rel (0) target = $region13
    $region12: #{product_layer_out.1} parent=1 // pred_region
      _
    $region13: #{product_layer_out.1} parent=1 // pred_fallthru
      _
    // Predicated region
    $region14: #{product_layer_out.1} parent=1 // pred_check
      _
    $region15: #{product_layer_out.1} parent=1 // pred_check_branch
      %19 = sbr.rel (0) target = $region17
    $region16: #{product_layer_out.1} parent=1 // pred_region
      _
    $region17: #{product_layer_out.1} parent=1 // pred_fallthru
      _
    // Predicated region
    $region18: #{product_layer_out.1} parent=1 // pred_check
      _
    $region19: #{product_layer_out.1} parent=1 // pred_check_branch
      %21 = sbr.rel (0) target = $region21
    $region20: #{product_layer_out.1} parent=1 // pred_region
      _
    $region21: #{product_layer_out.1} parent=1 // pred_fallthru
      _
    // Predicated region
    $region22: #{product_layer_out.1} parent=1 // pred_check
      _
    $region23: #{product_layer_out.1} parent=1 // pred_check_branch
      %23 = sbr.rel (0) target = $region25
    $region24: #{product_layer_out.1} parent=1 // pred_region
      _
    $region25: #{product_layer_out.1} parent=1 // pred_fallthru
      _
    %v24 = vld [vmem:[%s0] sm:$0xff]
    %v25 = vld [vmem:[%s2] sm:$0xff]
    %v26 = vld [vmem:[%s2 + $0x8] sm:$0xff]
    %v27 = vld [vmem:[%s2 + $0x10] sm:$0xff]
    %v28 = vld [vmem:[%s2 + $0x18] sm:$0xff]
    %v29 = vld [vmem:[%s1] sm:$0xff]
    %v30 = vld [vmem:[%s3] sm:$0xff]
    %v31 = vld [vmem:[%s3 + $0x8] sm:$0xff]
    %v32 = vld [vmem:[%s3 + $0x10] sm:$0xff]
    %v33 = vld [vmem:[%s3 + $0x18] sm:$0xff]
    %vm34 = vcmask 261120
    %v36 = vsel %vm34, %v29, 0
    %38 = vmatprep.subr.mxu0 0.0
    %39 = vmatpush1.msra.mxu0 0.0
    %40 = vmatprep.subr.mxu0 0.0
    %41 = vmatpush1.msra.mxu0 0.0
    %42 = vmatprep.subr.mxu0 0.0
    %43 = vmatpush1.msra.mxu0 0.0
    %44 = vmatprep.subr.mxu0 0.0
    %45 = vmatpush1.msra.mxu0 0.0
    %46 = vmatprep.subr.mxu0 0.0
    %47 = vmatpush1.msra.mxu0 0.0
    %48 = vmatprep.subr.mxu0 0.0
    %49 = vmatpush1.msra.mxu0 0.0
    %50 = vmatprep.subr.mxu0 0.0
    %51 = vmatpush1.msra.mxu0 0.0
    %52 = vmatprep.subr.mxu0 0.0
    %53 = vmatpush1.msra.mxu0 0.0
    %54 = vmatprep.subr.mxu0 0.0
    %55 = vmatpush1.msra.mxu0 0.0
    %56 = vmatprep.subr.mxu0 0.0
    %57 = vmatpush1.msra.mxu0 0.0
    %58 = vmatprep.subr.mxu0 0.0
    %59 = vmatpush1.msra.mxu0 0.0
    %60 = vmatprep.subr.mxu0 0.0
    %61 = vmatpush1.msra.mxu0 0.0
    %62 = vmatprep.subr.mxu0 0.0
    %63 = vmatpush1.msra.mxu0 %v33
    %64 = vmatprep.subr.mxu0 0.0
    %65 = vmatpush1.msra.mxu0 %v32
    %66 = vmatprep.subr.mxu0 0.0
    %67 = vmatpush1.msra.mxu0 %v31
    %68 = vmatprep.subr.mxu0 0.0
    %69 = vmatpush1.msra.mxu0 %v30
    %70 = vmatprep.subr.mxu0 0.0
    %71 = vmatpush2.msra.mxu0 0.0
    %72 = vmatprep.subr.mxu0 0.0
    %73 = vmatpush2.msra.mxu0 0.0
    %74 = vmatprep.subr.mxu0 0.0
    %75 = vmatpush2.msra.mxu0 0.0
    %76 = vmatprep.subr.mxu0 0.0
    %77 = vmatpush2.msra.mxu0 0.0
    %78 = vmatprep.subr.mxu0 0.0
    %79 = vmatpush2.msra.mxu0 0.0
    %80 = vmatprep.subr.mxu0 0.0
    %81 = vmatpush2.msra.mxu0 0.0
    %82 = vmatprep.subr.mxu0 0.0
    %83 = vmatpush2.msra.mxu0 0.0
    %84 = vmatprep.subr.mxu0 0.0
    %85 = vmatpush2.msra.mxu0 0.0
    %86 = vmatprep.subr.mxu0 0.0
    %87 = vmatpush2.msra.mxu0 0.0
    %88 = vmatprep.subr.mxu0 0.0
    %89 = vmatpush2.msra.mxu0 0.0
    %90 = vmatprep.subr.mxu0 0.0
    %91 = vmatpush2.msra.mxu0 0.0
    %92 = vmatprep.subr.mxu0 0.0
    %93 = vmatpush2.msra.mxu0 0.0
    %94 = vmatprep.subr.mxu0 0.0
    %95 = vmatpush2.msra.mxu0 0.0
    %96 = vmatprep.subr.mxu0 0.0
    %97 = vmatpush2.msra.mxu0 0.0
    %98 = vmatprep.subr.mxu0 0.0
    %99 = vmatpush2.msra.mxu0 0.0
    %100 = vmatprep.subr.mxu0 0.0
    %101 = vmatpush2.msra.mxu0 0.0
    %102 = vmatprep.mubr.f32.mxu0 0.0
    %103 = vmatmul.mubr.f32.gmra.mxu0 %v36
    %v104 = vpop.f32.mrf.mxu0
    %v105 = vadd.f32 0.0, %v104
    %v106 = vpop.f32.mrf.mxu0
    %107 = vdwg.mxu0
    %109 = vrot.lane.b32.xlu0 %v105, 64
    %v110 = vpop.permute.xlu0 %109
    %v112 = vmul.f32 %v105, %v110
    %v113 = vld [vmem:[%s4] sm:$0xff]
    %v114 = vld [vmem:[%s4 + $0x8] sm:$0xff]
    %v115 = vld [vmem:[%s4 + $0x10] sm:$0xff]
    %v116 = vld [vmem:[%s4 + $0x18] sm:$0xff]
    %v117 = vld [vmem:[%s4 + $0x20] sm:$0xff]
    %v118 = vld [vmem:[%s4 + $0x28] sm:$0xff]
    %v119 = vld [vmem:[%s4 + $0x30] sm:$0xff]
    %v120 = vld [vmem:[%s4 + $0x38] sm:$0xff]
    %vm121 = vcmask 523264
    %v123 = vsel %vm121, %v112, 0
    %125 = vmatprep.subr.mxu0 0.0
    %126 = vmatpush1.msra.mxu0 0.0
    %127 = vmatprep.subr.mxu0 0.0
    %128 = vmatpush1.msra.mxu0 0.0
    %129 = vmatprep.subr.mxu0 0.0
    %130 = vmatpush1.msra.mxu0 0.0
    %131 = vmatprep.subr.mxu0 0.0
    %132 = vmatpush1.msra.mxu0 0.0
    %133 = vmatprep.subr.mxu0 0.0
    %134 = vmatpush1.msra.mxu0 0.0
    %135 = vmatprep.subr.mxu0 0.0
    %136 = vmatpush1.msra.mxu0 0.0
    %137 = vmatprep.subr.mxu0 0.0
    %138 = vmatpush1.msra.mxu0 0.0
    %139 = vmatprep.subr.mxu0 0.0
    %140 = vmatpush1.msra.mxu0 0.0
    %141 = vmatprep.subr.mxu0 0.0
    %142 = vmatpush1.msra.mxu0 %v120
    %143 = vmatprep.subr.mxu0 0.0
    %144 = vmatpush1.msra.mxu0 %v119
    %145 = vmatprep.subr.mxu0 0.0
    %146 = vmatpush1.msra.mxu0 %v118
    %147 = vmatprep.subr.mxu0 0.0
    %148 = vmatpush1.msra.mxu0 %v117
    %149 = vmatprep.subr.mxu0 0.0
    %150 = vmatpush1.msra.mxu0 %v116
    %151 = vmatprep.subr.mxu0 0.0
    %152 = vmatpush1.msra.mxu0 %v115
    %153 = vmatprep.subr.mxu0 0.0
    %154 = vmatpush1.msra.mxu0 %v114
    %155 = vmatprep.subr.mxu0 0.0
    %156 = vmatpush1.msra.mxu0 %v113
    %157 = vmatprep.subr.mxu0 0.0
    %158 = vmatpush2.msra.mxu0 0.0
    %159 = vmatprep.subr.mxu0 0.0
    %160 = vmatpush2.msra.mxu0 0.0
    %161 = vmatprep.subr.mxu0 0.0
    %162 = vmatpush2.msra.mxu0 0.0
    %163 = vmatprep.subr.mxu0 0.0
    %164 = vmatpush2.msra.mxu0 0.0
    %165 = vmatprep.subr.mxu0 0.0
    %166 = vmatpush2.msra.mxu0 0.0
    %167 = vmatprep.subr.mxu0 0.0
    %168 = vmatpush2.msra.mxu0 0.0
    %169 = vmatprep.subr.mxu0 0.0
    %170 = vmatpush2.msra.mxu0 0.0
    %171 = vmatprep.subr.mxu0 0.0
    %172 = vmatpush2.msra.mxu0 0.0
    %173 = vmatprep.subr.mxu0 0.0
    %174 = vmatpush2.msra.mxu0 0.0
    %175 = vmatprep.subr.mxu0 0.0
    %176 = vmatpush2.msra.mxu0 0.0
    %177 = vmatprep.subr.mxu0 0.0
    %178 = vmatpush2.msra.mxu0 0.0
    %179 = vmatprep.subr.mxu0 0.0
    %180 = vmatpush2.msra.mxu0 0.0
    %181 = vmatprep.subr.mxu0 0.0
    %182 = vmatpush2.msra.mxu0 0.0
    %183 = vmatprep.subr.mxu0 0.0
    %184 = vmatpush2.msra.mxu0 0.0
    %185 = vmatprep.subr.mxu0 0.0
    %186 = vmatpush2.msra.mxu0 0.0
    %187 = vmatprep.subr.mxu0 0.0
    %188 = vmatpush2.msra.mxu0 0.0
    %189 = vmatprep.mubr.f32.mxu0 0.0
    %190 = vmatmul.mubr.f32.gmra.mxu0 %v123
    %v191 = vpop.f32.mrf.mxu0
    %v192 = vadd.f32 0.0, %v191
    %v193 = vpop.f32.mrf.mxu0
    %194 = vdwg.mxu0
    %v196 = vsel %vm34, %v24, 0
    %198 = vmatprep.subr.mxu0 0.0
    %199 = vmatpush1.msra.mxu0 0.0
    %200 = vmatprep.subr.mxu0 0.0
    %201 = vmatpush1.msra.mxu0 0.0
    %202 = vmatprep.subr.mxu0 0.0
    %203 = vmatpush1.msra.mxu0 0.0
    %204 = vmatprep.subr.mxu0 0.0
    %205 = vmatpush1.msra.mxu0 0.0
    %206 = vmatprep.subr.mxu0 0.0
    %207 = vmatpush1.msra.mxu0 0.0
    %208 = vmatprep.subr.mxu0 0.0
    %209 = vmatpush1.msra.mxu0 0.0
    %210 = vmatprep.subr.mxu0 0.0
    %211 = vmatpush1.msra.mxu0 0.0
    %212 = vmatprep.subr.mxu0 0.0
    %213 = vmatpush1.msra.mxu0 0.0
    %214 = vmatprep.subr.mxu0 0.0
    %215 = vmatpush1.msra.mxu0 0.0
    %216 = vmatprep.subr.mxu0 0.0
    %217 = vmatpush1.msra.mxu0 0.0
    %218 = vmatprep.subr.mxu0 0.0
    %219 = vmatpush1.msra.mxu0 0.0
    %220 = vmatprep.subr.mxu0 0.0
    %221 = vmatpush1.msra.mxu0 0.0
    %222 = vmatprep.subr.mxu0 0.0
    %223 = vmatpush1.msra.mxu0 %v28
    %224 = vmatprep.subr.mxu0 0.0
    %225 = vmatpush1.msra.mxu0 %v27
    %226 = vmatprep.subr.mxu0 0.0
    %227 = vmatpush1.msra.mxu0 %v26
    %228 = vmatprep.subr.mxu0 0.0
    %229 = vmatpush1.msra.mxu0 %v25
    %230 = vmatprep.subr.mxu0 0.0
    %231 = vmatpush2.msra.mxu0 0.0
    %232 = vmatprep.subr.mxu0 0.0
    %233 = vmatpush2.msra.mxu0 0.0
    %234 = vmatprep.subr.mxu0 0.0
    %235 = vmatpush2.msra.mxu0 0.0
    %236 = vmatprep.subr.mxu0 0.0
    %237 = vmatpush2.msra.mxu0 0.0
    %238 = vmatprep.subr.mxu0 0.0
    %239 = vmatpush2.msra.mxu0 0.0
    %240 = vmatprep.subr.mxu0 0.0
    %241 = vmatpush2.msra.mxu0 0.0
    %242 = vmatprep.subr.mxu0 0.0
    %243 = vmatpush2.msra.mxu0 0.0
    %244 = vmatprep.subr.mxu0 0.0
    %245 = vmatpush2.msra.mxu0 0.0
    %246 = vmatprep.subr.mxu0 0.0
    %247 = vmatpush2.msra.mxu0 0.0
    %248 = vmatprep.subr.mxu0 0.0
    %249 = vmatpush2.msra.mxu0 0.0
    %250 = vmatprep.subr.mxu0 0.0
    %251 = vmatpush2.msra.mxu0 0.0
    %252 = vmatprep.subr.mxu0 0.0
    %253 = vmatpush2.msra.mxu0 0.0
    %254 = vmatprep.subr.mxu0 0.0
    %255 = vmatpush2.msra.mxu0 0.0
    %256 = vmatprep.subr.mxu0 0.0
    %257 = vmatpush2.msra.mxu0 0.0
    %258 = vmatprep.subr.mxu0 0.0
    %259 = vmatpush2.msra.mxu0 0.0
    %260 = vmatprep.subr.mxu0 0.0
    %261 = vmatpush2.msra.mxu0 0.0
    %262 = vmatprep.mubr.f32.mxu0 0.0
    %263 = vmatmul.mubr.f32.gmra.mxu0 %v196
    %v264 = vpop.f32.mrf.mxu0
    %v265 = vadd.f32 %v192, %v264
    %v266 = vpop.f32.mrf.mxu0
    %267 = vdwg.mxu0
    %v268 = vld [vmem:[%s5] sm:$0x1]
    %v270 = vlaneseq
    %v271 = vshrl.u32 %v270, 7
    %v272 = vsub.s32 0, %v271
    %v273 = vrot.slane %v268, %v272
    %v275 = vadd.f32 %v265, %v273
    %276 = vst.msk [vmem:[#allocation2] sm:$0xff] %vm34, %v275
    // Predicated region
    $region26: #{product_layer_out.1} parent=1 // pred_check
      _
    $region27: #{product_layer_out.1} parent=1 // pred_check_branch
      %278 = sbr.rel (0) target = $region29
    $region28: #{product_layer_out.1} parent=1 // pred_region
      %s280 = ssub.s32 128, 128
      %281 = vsyncadd [#allocation3], %s280
      %s283 = sshll.u32 [#allocation2], 4
      %s284 = int_to_ptr.vmem [resolvable:$true] %s283
      %286 = dma.vmem_to_hbm [thread:$0]  %s284, 128, %s6, [#allocation3]
    $region29: #{product_layer_out.1} parent=1 // pred_fallthru
      _
    // Predicated region
    $region30: #{product_layer_out.1} parent=1 // pred_check
      _
    $region31: #{product_layer_out.1} parent=1 // pred_check_branch
      %288 = sbr.rel (0) target = $region33
    $region32: #{product_layer_out.1} parent=1 // pred_region
      %289 = dma.done [#allocation3], 128
    $region33: #{product_layer_out.1} parent=1 // pred_fallthru
      _
    %290 = vsyncpa [#allocation3], 1

</llo_original>
